<compile_context>
chip_gen: v7x
topology: tpu7x:2x2x1
jax: 0.10.0
libtpu: 0.0.40
codegen_flags: <defaults>
</compile_context>

<pallas_src>
import jax
import jax.numpy as jnp
from jax.experimental import pallas as pl
from jax.experimental.pallas import tpu as pltpu


def _head_kernel(c6_ref, c7_ref, c8_ref, w_ref, b_ref, out_ref):
    # c*_ref: (Bt, H) CLS rows (native dtype, e.g. bf16).  w_ref: (3, H) f32
    # lane-dense weight slabs (rows = hidden layers 6, 7, 8 in concat order).
    # b_ref: (1,) f32 in SMEM.  out_ref: (Bt, 1) f32.
    #
    # Upcast to f32 right after load: keeps the DMA at bf16 width while
    # avoiding v5e's missing bf16 VPU arithmetic path.
    c6 = c6_ref[...].astype(jnp.float32)
    c7 = c7_ref[...].astype(jnp.float32)
    c8 = c8_ref[...].astype(jnp.float32)

    # concat([c6,c7,c8], -1) @ W.T == sum of per-slab elementwise products
    # reduced over H: VPU multiplies + a single XLU lane reduce.  Keep it off
    # the MXU (an N=1 matmul would use 1/256 of the MXU columns).
    prod = (c6 * w_ref[0:1, :]
            + c7 * w_ref[1:2, :]
            + c8 * w_ref[2:3, :])                                  # (Bt, H) f32
    out_ref[...] = jnp.sum(prod, axis=-1, keepdims=True) + b_ref[0]  # (Bt, 1)


def pack_head_params(weight, bias):
    """Pack nn.Linear(3H, 1) params once, outside the per-step call.

    weight: (1, 3H) -> lane-dense (3, H) f32, rows = slabs for layers 6, 7, 8
    (torch.cat order; nn.Linear weight is (out, in) = (1, 2304)).
    """
    H = weight.shape[-1] // 3
    w_packed = weight.astype(jnp.float32).reshape(3, H)
    b_packed = bias.astype(jnp.float32).reshape(1)
    return w_packed, b_packed


@jax.jit
def deberta_layer_cat_head(h6, h7, h8, w_packed, b_packed):
    """h6/h7/h8: (B, S, H) hidden states (any float dtype);
    w_packed: (3, H) f32; b_packed: (1,) f32  ->  (B,) f32."""
    B, S, H = h6.shape

    # CLS pooling: only seq position 0 of each layer is an operand.  With
    # allow_input_fusion below, XLA fuses this slice into the kernel's operand
    # DMA instead of materializing (B, H) intermediates in HBM.
    cls6 = h6[:, 0, :]
    cls7 = h7[:, 0, :]
    cls8 = h8[:, 0, :]

    # Batch tile: single pass for small B; 512-row tiles (multiple of 8) for
    # production batch sizes.  Sized against v7x's 32 MiB scoped-VMEM default
    # (3 inputs x 512 x 768 x 4 B x 2 buffers ~ 9 MiB) so it is
    # generation-portable; ragged last tiles are handled by cdiv + masked
    # boundary writes.
    bt = B if B <= 512 else 512
    grid = (pl.cdiv(B, bt),)

    row_spec = pl.BlockSpec((bt, H), lambda i: (i, 0))

    out = pl.pallas_call(
        _head_kernel,
        out_shape=jax.ShapeDtypeStruct((B, 1), jnp.float32),
        grid=grid,
        in_specs=[
            row_spec, row_spec, row_spec,                 # CLS rows (native dtype)
            pl.BlockSpec((3, H), lambda i: (0, 0)),       # weight: VMEM-resident across B tiles
            pl.BlockSpec(memory_space=pltpu.MemorySpace.SMEM),  # bias scalar
        ],
        out_specs=pl.BlockSpec((bt, 1), lambda i: (i, 0)),
        compiler_params=pltpu.CompilerParams(
            # Batch tiles are independent -> shard across v7x's 2 TensorCores;
            # harmless no-op on single-TC v5e/v6e.
            dimension_semantics=("parallel",),
            # Fuse the seq-0 slice producers into the operand DMAs of the
            # three hidden-state inputs (not the pre-packed params).
            allow_input_fusion=[True, True, True, False, False],
        ),
    )(cls6, cls7, cls8, w_packed, b_packed)

    return out.reshape(B)                                  # .view(batch_size)


if __name__ == "__main__":
    B, S, H, VOCAB = 2, 8, 768, 128        # hidden=768 implied by Linear(768*3, 1)
    key = jax.random.PRNGKey(0)
    k_ids, k_emb, k_w, k_b = jax.random.split(key, 4)

    # Module inputs (for shape fidelity).
    input_ids = jax.random.randint(k_ids, (B, S), 0, VOCAB, dtype=jnp.int32)
    attention_mask = jnp.ones((B, S), dtype=jnp.int32)

    # TODO(synk): pretrained DeBERTa encoder (AutoModel.from_pretrained) is
    # untranslatable; stand in with a deterministic embedding lookup per
    # "layer" to produce hidden states 6, 7, 8.  Emit them in bf16, the
    # common encoder output dtype, to exercise the halved-DMA boundary path.
    embed = jax.random.normal(k_emb, (VOCAB, H), dtype=jnp.float32) * 0.02
    base = embed[input_ids] * attention_mask[..., None].astype(jnp.float32)   # (B, S, H)
    h6 = (base * 1.0).astype(jnp.bfloat16)
    h7 = (base * 1.1).astype(jnp.bfloat16)
    h8 = (base * 1.2).astype(jnp.bfloat16)

    # Deterministic head parameters (nn.Linear(768*3, 1)), packed once.
    weight = jax.random.normal(k_w, (1, 3 * H), dtype=jnp.float32) * 0.02
    bias = jax.random.normal(k_b, (1,), dtype=jnp.float32) * 0.02
    w_packed, b_packed = pack_head_params(weight, bias)

    out = deberta_layer_cat_head(h6, h7, h8, w_packed, b_packed)
    out = jax.block_until_ready(out)

    # Plain-JAX reference of the same head math (f32 from the same bf16 values).
    pooled = jnp.concatenate(
        [h6[:, 0, :], h7[:, 0, :], h8[:, 0, :]], axis=-1).astype(jnp.float32)
    ref = (pooled @ weight.T + bias).reshape(B)

    assert out.shape == (B,)
    assert jnp.allclose(out, ref, atol=1e-4, rtol=1e-4)
    print("KERNEL_OK")
</pallas_src>

<mosaic_0001>
module attributes {stable_mosaic.version = 11 : i64} {
  func.func @_head_kernel(%arg0: i32, %arg1: memref<2x768xbf16, #tpu.memory_space<vmem>>, %arg2: memref<2x768xbf16, #tpu.memory_space<vmem>>, %arg3: memref<2x768xbf16, #tpu.memory_space<vmem>>, %arg4: memref<3x768xf32, #tpu.memory_space<vmem>>, %arg5: memref<1xf32, #tpu.memory_space<smem>>, %arg6: memref<2x1xf32, #tpu.memory_space<vmem>>) attributes {dimension_semantics = [#tpu.dimension_semantics<parallel>], iteration_bounds = array<i64: 1>, scalar_prefetch = 0 : i64, scratch_operands = 0 : i64, tpu.core_type = #tpu.core_type<tc>, window_params = [{transform_indices = @transform_0, window_bounds = array<i64: 2, 768>}, {transform_indices = @transform_1, window_bounds = array<i64: 2, 768>}, {transform_indices = @transform_2, window_bounds = array<i64: 2, 768>}, {pipeline_mode = #tpu.pipeline_mode<synchronous>, transform_indices = @transform_3, window_bounds = array<i64: 3, 768>}, {transform_indices = @transform_4, window_bounds = array<i64: 1>}, {transform_indices = @transform_5, window_bounds = array<i64: 2, 1>}]} {
    %c0 = arith.constant 0 : index
    %c0_0 = arith.constant 0 : index
    %0 = vector.load %arg1[%c0, %c0_0] : memref<2x768xbf16, #tpu.memory_space<vmem>>, vector<2x768xbf16>
    %1 = arith.extf %0 : vector<2x768xbf16> to vector<2x768xf32>
    %c0_1 = arith.constant 0 : index
    %c0_2 = arith.constant 0 : index
    %2 = vector.load %arg2[%c0_1, %c0_2] : memref<2x768xbf16, #tpu.memory_space<vmem>>, vector<2x768xbf16>
    %3 = arith.extf %2 : vector<2x768xbf16> to vector<2x768xf32>
    %c0_3 = arith.constant 0 : index
    %c0_4 = arith.constant 0 : index
    %4 = vector.load %arg3[%c0_3, %c0_4] : memref<2x768xbf16, #tpu.memory_space<vmem>>, vector<2x768xbf16>
    %5 = arith.extf %4 : vector<2x768xbf16> to vector<2x768xf32>
    %c0_5 = arith.constant 0 : index
    %c0_6 = arith.constant 0 : index
    %6 = vector.load %arg4[%c0_5, %c0_6] : memref<3x768xf32, #tpu.memory_space<vmem>>, vector<1x768xf32>
    %7 = vector.broadcast %6 : vector<1x768xf32> to vector<2x768xf32>
    %8 = arith.mulf %1, %7 : vector<2x768xf32>
    %c1 = arith.constant 1 : index
    %c0_7 = arith.constant 0 : index
    %9 = vector.load %arg4[%c1, %c0_7] : memref<3x768xf32, #tpu.memory_space<vmem>>, vector<1x768xf32>
    %10 = vector.broadcast %9 : vector<1x768xf32> to vector<2x768xf32>
    %11 = arith.mulf %3, %10 : vector<2x768xf32>
    %12 = arith.addf %8, %11 : vector<2x768xf32>
    %c2 = arith.constant 2 : index
    %c0_8 = arith.constant 0 : index
    %13 = vector.load %arg4[%c2, %c0_8] : memref<3x768xf32, #tpu.memory_space<vmem>>, vector<1x768xf32>
    %14 = vector.broadcast %13 : vector<1x768xf32> to vector<2x768xf32>
    %15 = arith.mulf %5, %14 : vector<2x768xf32>
    %16 = arith.addf %12, %15 : vector<2x768xf32>
    %cst = arith.constant dense<0.000000e+00> : vector<2xf32>
    %17 = vector.multi_reduction <add>, %16, %cst [1] : vector<2x768xf32> to vector<2xf32>
    %18 = vector.shape_cast %17 : vector<2xf32> to vector<2x1xf32>
    %c0_9 = arith.constant 0 : index
    %19 = memref.load %arg5[%c0_9] : memref<1xf32, #tpu.memory_space<smem>>
    %20 = vector.broadcast %19 : f32 to vector<2x1xf32>
    %21 = arith.addf %18, %20 : vector<2x1xf32>
    %c0_10 = arith.constant 0 : index
    %c0_11 = arith.constant 0 : index
    %22 = vector.load %arg6[%c0_10, %c0_11] : memref<2x1xf32, #tpu.memory_space<vmem>>, vector<2x1xf32>
    tpu.vector_store %arg6[%c0_10, %c0_11], %21 {strides = array<i32>} : memref<2x1xf32, #tpu.memory_space<vmem>>, vector<2x1xf32>,
    return
  }
  func.func @transform_0(%arg0: i32) -> (i32, i32) {
    %c0_i32 = arith.constant 0 : i32
    %c0_i32_0 = arith.constant 0 : i32
    return %arg0, %c0_i32 : i32, i32
  }
  func.func @transform_1(%arg0: i32) -> (i32, i32) {
    %c0_i32 = arith.constant 0 : i32
    %c0_i32_0 = arith.constant 0 : i32
    return %arg0, %c0_i32 : i32, i32
  }
  func.func @transform_2(%arg0: i32) -> (i32, i32) {
    %c0_i32 = arith.constant 0 : i32
    %c0_i32_0 = arith.constant 0 : i32
    return %arg0, %c0_i32 : i32, i32
  }
  func.func @transform_3(%arg0: i32) -> (i32, i32) {
    %c0_i32 = arith.constant 0 : i32
    %c0_i32_0 = arith.constant 0 : i32
    %c0_i32_1 = arith.constant 0 : i32
    return %c0_i32, %c0_i32_0 : i32, i32
  }
  func.func @transform_4(%arg0: i32) -> i32 {
    %c0_i32 = arith.constant 0 : i32
    %c0_i32_0 = arith.constant 0 : i32
    return %c0_i32 : i32
  }
  func.func @transform_5(%arg0: i32) -> (i32, i32) {
    %c0_i32 = arith.constant 0 : i32
    %c0_i32_0 = arith.constant 0 : i32
    return %arg0, %c0_i32 : i32, i32
  }
}

</mosaic_0001>

<llo_original>
// kernel: deberta_layer_cat_head.2
$region0: #{deberta_layer_cat_head.2}
  #allocation0 [shape = 'u32[]', space=smem, size = 0x4, offset = 0x4, fixed_abs, tag = 'smem constant byte address 0x4 - core index']
  #allocation1 [shape = 'u32[144,128]{1,0:T(1,128)}', space=vmem, size = 0x12000, scoped, tag = 'internal scratch']
  #allocation2 [shape = 'f32[1]{0:T(128)S(6)}', space=smem, size = 0x200, scoped, tag = 'scoped memory for deberta_layer_cat_head.2']
  %s0 = inlined_call_operand.vmem [shape: f32[3,768], index: 0, kind: input, shape index: {}]
  %s1 = inlined_call_operand.<no memory space> [shape: f32[1], index: 1, kind: input, shape index: {}]
  %s2 = inlined_call_operand.vmem [shape: bf16[2,1,768], index: 2, kind: input, shape index: {}]
  %s3 = inlined_call_operand.vmem [shape: bf16[2,1,768], index: 3, kind: input, shape index: {}]
  %s4 = inlined_call_operand.vmem [shape: bf16[2,1,768], index: 4, kind: input, shape index: {}]
  %s5 = inlined_call_operand.vmem [shape: f32[2,1], index: 5, kind: output, shape index: {}]
  %s6 = sld [smem:[#allocation0]]
  $region30: #{deberta_layer_cat_head.2} parent=0
    _
  %s8 = ssub.s32 1, %s6
  %s9 = scalar_select 0, %s8, %s6
  %10 = sst [smem:[#allocation2]] %s1
  $region1: #{deberta_layer_cat_head.2} parent=0
    #allocation3 [shape = 'u8[3072]{0}', space=vmem, size = 0xc00, dematerialized = true, scoped, tag = 'FusionAdapter Buffer %copy_bitcast_fusion.5 = bf16[2,768]{1,0:T(2,128)(2,1)} fusion(%param_4.3), kind=kLoop, calls=%fused_computation.3.clone.clone, metadata={op_name="jit(deberta_layer_cat_head)/squeeze" stack_frame_id=7}']
    #allocation4 [shape = 'u8[3072]{0}', space=vmem, size = 0xc00, dematerialized = true, scoped, tag = 'FusionAdapter Buffer %copy_bitcast_fusion.3 = bf16[2,768]{1,0:T(2,128)(2,1)} fusion(%param_3.3), kind=kLoop, calls=%fused_computation.2.clone.clone, metadata={op_name="jit(deberta_layer_cat_head)/squeeze" stack_frame_id=8}']
    #allocation5 [shape = 'u8[3072]{0}', space=vmem, size = 0xc00, dematerialized = true, scoped, tag = 'FusionAdapter Buffer %copy_bitcast_fusion.1 = bf16[2,768]{1,0:T(2,128)(2,1)} fusion(%param_2.3), kind=kLoop, calls=%fused_computation.clone.clone, metadata={op_name="jit(deberta_layer_cat_head)/squeeze" stack_frame_id=9}']
    // Predicated region
    $region2: #{deberta_layer_cat_head.2} parent=1 // pred_check
      _
    $region3: #{deberta_layer_cat_head.2} parent=1 // pred_check_branch
      %12 = sbr.rel (0) target = $region5
    $region4: #{deberta_layer_cat_head.2} parent=1 // pred_region
      _
    $region5: #{deberta_layer_cat_head.2} parent=1 // pred_fallthru
      _
    // Predicated region
    $region6: #{deberta_layer_cat_head.2} parent=1 // pred_check
      _
    $region7: #{deberta_layer_cat_head.2} parent=1 // pred_check_branch
      %14 = sbr.rel (0) target = $region9
    $region8: #{deberta_layer_cat_head.2} parent=1 // pred_region
      _
    $region9: #{deberta_layer_cat_head.2} parent=1 // pred_fallthru
      _
    // Predicated region
    $region10: #{deberta_layer_cat_head.2} parent=1 // pred_check
      _
    $region11: #{deberta_layer_cat_head.2} parent=1 // pred_check_branch
      %16 = sbr.rel (0) target = $region13
    $region12: #{deberta_layer_cat_head.2} parent=1 // pred_region
      _
    $region13: #{deberta_layer_cat_head.2} parent=1 // pred_fallthru
      _
    // Predicated region
    $region14: #{deberta_layer_cat_head.2} parent=1 // pred_check
      _
    $region15: #{deberta_layer_cat_head.2} parent=1 // pred_check_branch
      %18 = sbr.rel (0) target = $region17
    $region16: #{deberta_layer_cat_head.2} parent=1 // pred_region
      _
    $region17: #{deberta_layer_cat_head.2} parent=1 // pred_fallthru
      _
    // Predicated region
    $region18: #{deberta_layer_cat_head.2} parent=1 // pred_check
      _
    $region19: #{deberta_layer_cat_head.2} parent=1 // pred_check_branch
      %20 = sbr.rel (0) target = $region21
    $region20: #{deberta_layer_cat_head.2} parent=1 // pred_region
      _
    $region21: #{deberta_layer_cat_head.2} parent=1 // pred_fallthru
      _
    %s22 = sand.u32 255, 3
    %s23 = sand.u32 %s22, 3
    %v24 = vld [vmem:[%s4] ss:$6 sm:%s23]
    %v25 = vunpack.i.l.bf16 %v24
    %v27 = vunpack.i.h.bf16 %v24
    %v29 = vpack.c.bf16 0.0, %v25
    %31 = vst [vmem:[#allocation3] sm:$0x1] %v29
    %s32 = scalar_lea.vmem %s4, 1
    %s34 = sand.u32 255, 3
    %s35 = sand.u32 %s34, 3
    %v36 = vld [vmem:[%s32] ss:$6 sm:%s35]
    %v37 = vunpack.i.l.bf16 %v36
    %v39 = vunpack.i.h.bf16 %v36
    %s41 = scalar_lea.vmem [#allocation3], 1
    %v42 = vpack.c.bf16 0.0, %v37
    %44 = vst [vmem:[%s41] sm:$0x1] %v42
    %s45 = scalar_lea.vmem %s4, 2
    %s47 = sand.u32 255, 3
    %s48 = sand.u32 %s47, 3
    %v49 = vld [vmem:[%s45] ss:$6 sm:%s48]
    %v50 = vunpack.i.l.bf16 %v49
    %v52 = vunpack.i.h.bf16 %v49
    %s54 = scalar_lea.vmem [#allocation3], 2
    %v55 = vpack.c.bf16 0.0, %v50
    %57 = vst [vmem:[%s54] sm:$0x1] %v55
    %s58 = scalar_lea.vmem %s4, 3
    %s60 = sand.u32 255, 3
    %s61 = sand.u32 %s60, 3
    %v62 = vld [vmem:[%s58] ss:$6 sm:%s61]
    %v63 = vunpack.i.l.bf16 %v62
    %v65 = vunpack.i.h.bf16 %v62
    %s67 = scalar_lea.vmem [#allocation3], 3
    %v68 = vpack.c.bf16 0.0, %v63
    %70 = vst [vmem:[%s67] sm:$0x1] %v68
    %s71 = scalar_lea.vmem %s4, 4
    %s73 = sand.u32 255, 3
    %s74 = sand.u32 %s73, 3
    %v75 = vld [vmem:[%s71] ss:$6 sm:%s74]
    %v76 = vunpack.i.l.bf16 %v75
    %v78 = vunpack.i.h.bf16 %v75
    %s80 = scalar_lea.vmem [#allocation3], 4
    %v81 = vpack.c.bf16 0.0, %v76
    %83 = vst [vmem:[%s80] sm:$0x1] %v81
    %s84 = scalar_lea.vmem %s4, 5
    %s86 = sand.u32 255, 3
    %s87 = sand.u32 %s86, 3
    %v88 = vld [vmem:[%s84] ss:$6 sm:%s87]
    %v89 = vunpack.i.l.bf16 %v88
    %v91 = vunpack.i.h.bf16 %v88
    %s93 = scalar_lea.vmem [#allocation3], 5
    %v94 = vpack.c.bf16 0.0, %v89
    %96 = vst [vmem:[%s93] sm:$0x1] %v94
    %s98 = sand.u32 255, 3
    %s99 = sand.u32 %s98, 3
    %v100 = vld [vmem:[%s3] ss:$6 sm:%s99]
    %v101 = vunpack.i.l.bf16 %v100
    %v103 = vunpack.i.h.bf16 %v100
    %v105 = vpack.c.bf16 0.0, %v101
    %107 = vst [vmem:[#allocation4] sm:$0x1] %v105
    %s108 = scalar_lea.vmem %s3, 1
    %s110 = sand.u32 255, 3
    %s111 = sand.u32 %s110, 3
    %v112 = vld [vmem:[%s108] ss:$6 sm:%s111]
    %v113 = vunpack.i.l.bf16 %v112
    %v115 = vunpack.i.h.bf16 %v112
    %s117 = scalar_lea.vmem [#allocation4], 1
    %v118 = vpack.c.bf16 0.0, %v113
    %120 = vst [vmem:[%s117] sm:$0x1] %v118
    %s121 = scalar_lea.vmem %s3, 2
    %s123 = sand.u32 255, 3
    %s124 = sand.u32 %s123, 3
    %v125 = vld [vmem:[%s121] ss:$6 sm:%s124]
    %v126 = vunpack.i.l.bf16 %v125
    %v128 = vunpack.i.h.bf16 %v125
    %s130 = scalar_lea.vmem [#allocation4], 2
    %v131 = vpack.c.bf16 0.0, %v126
    %133 = vst [vmem:[%s130] sm:$0x1] %v131
    %s134 = scalar_lea.vmem %s3, 3
    %s136 = sand.u32 255, 3
    %s137 = sand.u32 %s136, 3
    %v138 = vld [vmem:[%s134] ss:$6 sm:%s137]
    %v139 = vunpack.i.l.bf16 %v138
    %v141 = vunpack.i.h.bf16 %v138
    %s143 = scalar_lea.vmem [#allocation4], 3
    %v144 = vpack.c.bf16 0.0, %v139
    %146 = vst [vmem:[%s143] sm:$0x1] %v144
    %s147 = scalar_lea.vmem %s3, 4
    %s149 = sand.u32 255, 3
    %s150 = sand.u32 %s149, 3
    %v151 = vld [vmem:[%s147] ss:$6 sm:%s150]
    %v152 = vunpack.i.l.bf16 %v151
    %v154 = vunpack.i.h.bf16 %v151
    %s156 = scalar_lea.vmem [#allocation4], 4
    %v157 = vpack.c.bf16 0.0, %v152
    %159 = vst [vmem:[%s156] sm:$0x1] %v157
    %s160 = scalar_lea.vmem %s3, 5
    %s162 = sand.u32 255, 3
    %s163 = sand.u32 %s162, 3
    %v164 = vld [vmem:[%s160] ss:$6 sm:%s163]
    %v165 = vunpack.i.l.bf16 %v164
    %v167 = vunpack.i.h.bf16 %v164
    %s169 = scalar_lea.vmem [#allocation4], 5
    %v170 = vpack.c.bf16 0.0, %v165
    %172 = vst [vmem:[%s169] sm:$0x1] %v170
    %s174 = sand.u32 255, 3
    %s175 = sand.u32 %s174, 3
    %v176 = vld [vmem:[%s2] ss:$6 sm:%s175]
    %v177 = vunpack.i.l.bf16 %v176
    %v179 = vunpack.i.h.bf16 %v176
    %v181 = vpack.c.bf16 0.0, %v177
    %183 = vst [vmem:[#allocation5] sm:$0x1] %v181
    %s184 = scalar_lea.vmem %s2, 1
    %s186 = sand.u32 255, 3
    %s187 = sand.u32 %s186, 3
    %v188 = vld [vmem:[%s184] ss:$6 sm:%s187]
    %v189 = vunpack.i.l.bf16 %v188
    %v191 = vunpack.i.h.bf16 %v188
    %s193 = scalar_lea.vmem [#allocation5], 1
    %v194 = vpack.c.bf16 0.0, %v189
    %196 = vst [vmem:[%s193] sm:$0x1] %v194
    %s197 = scalar_lea.vmem %s2, 2
    %s199 = sand.u32 255, 3
    %s200 = sand.u32 %s199, 3
    %v201 = vld [vmem:[%s197] ss:$6 sm:%s200]
    %v202 = vunpack.i.l.bf16 %v201
    %v204 = vunpack.i.h.bf16 %v201
    %s206 = scalar_lea.vmem [#allocation5], 2
    %v207 = vpack.c.bf16 0.0, %v202
    %209 = vst [vmem:[%s206] sm:$0x1] %v207
    %s210 = scalar_lea.vmem %s2, 3
    %s212 = sand.u32 255, 3
    %s213 = sand.u32 %s212, 3
    %v214 = vld [vmem:[%s210] ss:$6 sm:%s213]
    %v215 = vunpack.i.l.bf16 %v214
    %v217 = vunpack.i.h.bf16 %v214
    %s219 = scalar_lea.vmem [#allocation5], 3
    %v220 = vpack.c.bf16 0.0, %v215
    %222 = vst [vmem:[%s219] sm:$0x1] %v220
    %s223 = scalar_lea.vmem %s2, 4
    %s225 = sand.u32 255, 3
    %s226 = sand.u32 %s225, 3
    %v227 = vld [vmem:[%s223] ss:$6 sm:%s226]
    %v228 = vunpack.i.l.bf16 %v227
    %v230 = vunpack.i.h.bf16 %v227
    %s232 = scalar_lea.vmem [#allocation5], 4
    %v233 = vpack.c.bf16 0.0, %v228
    %235 = vst [vmem:[%s232] sm:$0x1] %v233
    %s236 = scalar_lea.vmem %s2, 5
    %s238 = sand.u32 255, 3
    %s239 = sand.u32 %s238, 3
    %v240 = vld [vmem:[%s236] ss:$6 sm:%s239]
    %v241 = vunpack.i.l.bf16 %v240
    %v243 = vunpack.i.h.bf16 %v240
    %s245 = scalar_lea.vmem [#allocation5], 5
    %v246 = vpack.c.bf16 0.0, %v241
    %248 = vst [vmem:[%s245] sm:$0x1] %v246
    %v249 = vld [vmem:[#allocation3] sm:$0x3f]
    %v250 = vunpack.c.l.bf16 %v249
    %v251 = vunpack.c.h.bf16 %v249
    %v252 = vld [vmem:[#allocation4] sm:$0x3f]
    %v253 = vunpack.c.l.bf16 %v252
    %v254 = vunpack.c.h.bf16 %v252
    %v255 = vld [vmem:[#allocation5] sm:$0x3f]
    %v256 = vunpack.c.l.bf16 %v255
    %v257 = vunpack.c.h.bf16 %v255
    %v258 = vld [vmem:[%s0] ss:$4 sm:$0x3f]
    %v260 = vlaneseq
    %v261 = vshrl.u32 %v260, 7
    %v262 = vsub.s32 0, %v261
    %v263 = vrot.slane %v258, %v262
    %v264 = vlaneseq
    %v265 = vshrl.u32 %v264, 7
    %v266 = vsub.s32 1, %v265
    %v267 = vrot.slane %v258, %v266
    %v268 = vlaneseq
    %v269 = vshrl.u32 %v268, 7
    %v270 = vsub.s32 2, %v269
    %v271 = vrot.slane %v258, %v270
    %v272 = vlaneseq
    %v273 = vshrl.u32 %v272, 7
    %v274 = vsub.s32 3, %v273
    %v275 = vrot.slane %v258, %v274
    %v276 = vlaneseq
    %v277 = vshrl.u32 %v276, 7
    %v278 = vsub.s32 4, %v277
    %v279 = vrot.slane %v258, %v278
    %v280 = vlaneseq
    %v281 = vshrl.u32 %v280, 7
    %v282 = vsub.s32 5, %v281
    %v283 = vrot.slane %v258, %v282
    %v284 = vcombine.low %v263, %v267
    %v285 = vcombine.low %v271, %v275
    %v287 = vunpack.c.l.s4 1983009808
    %v288 = vunpack.c.0.s8 %v287
    %v289 = vlaneseq
    %v290 = vshrl.u32 %v289, 7
    %v291 = vsub.s32 %v288, %v290
    %v292 = vrot.slane %v284, %v291
    %v294 = vunpack.c.l.s4 1983009808
    %v295 = vunpack.c.0.s8 %v294
    %v296 = vlaneseq
    %v297 = vshrl.u32 %v296, 7
    %v298 = vsub.s32 %v295, %v297
    %v299 = vrot.slane %v285, %v298
    %v300 = vcombine.low %v292, %v299
    %v301 = vcombine.low %v279, %v283
    %v303 = vunpack.c.l.s4 1983009808
    %v304 = vunpack.c.0.s8 %v303
    %v305 = vlaneseq
    %v306 = vshrl.u32 %v305, 7
    %v307 = vsub.s32 %v304, %v306
    %v308 = vrot.slane %v301, %v307
    %v311 = vmul.f32 %v250, %v300
    %v312 = vmul.f32 %v251, %v308
    %s313 = scalar_lea.vmem %s0, 1
    %v314 = vld [vmem:[%s313] ss:$4 sm:$0x3f]
    %v316 = vlaneseq
    %v317 = vshrl.u32 %v316, 7
    %v318 = vsub.s32 0, %v317
    %v319 = vrot.slane %v314, %v318
    %v320 = vlaneseq
    %v321 = vshrl.u32 %v320, 7
    %v322 = vsub.s32 1, %v321
    %v323 = vrot.slane %v314, %v322
    %v324 = vlaneseq
    %v325 = vshrl.u32 %v324, 7
    %v326 = vsub.s32 2, %v325
    %v327 = vrot.slane %v314, %v326
    %v328 = vlaneseq
    %v329 = vshrl.u32 %v328, 7
    %v330 = vsub.s32 3, %v329
    %v331 = vrot.slane %v314, %v330
    %v332 = vlaneseq
    %v333 = vshrl.u32 %v332, 7
    %v334 = vsub.s32 4, %v333
    %v335 = vrot.slane %v314, %v334
    %v336 = vlaneseq
    %v337 = vshrl.u32 %v336, 7
    %v338 = vsub.s32 5, %v337
    %v339 = vrot.slane %v314, %v338
    %v340 = vcombine.low %v319, %v323
    %v341 = vcombine.low %v327, %v331
    %v343 = vunpack.c.l.s4 1983009808
    %v344 = vunpack.c.0.s8 %v343
    %v345 = vlaneseq
    %v346 = vshrl.u32 %v345, 7
    %v347 = vsub.s32 %v344, %v346
    %v348 = vrot.slane %v340, %v347
    %v350 = vunpack.c.l.s4 1983009808
    %v351 = vunpack.c.0.s8 %v350
    %v352 = vlaneseq
    %v353 = vshrl.u32 %v352, 7
    %v354 = vsub.s32 %v351, %v353
    %v355 = vrot.slane %v341, %v354
    %v356 = vcombine.low %v348, %v355
    %v357 = vcombine.low %v335, %v339
    %v359 = vunpack.c.l.s4 1983009808
    %v360 = vunpack.c.0.s8 %v359
    %v361 = vlaneseq
    %v362 = vshrl.u32 %v361, 7
    %v363 = vsub.s32 %v360, %v362
    %v364 = vrot.slane %v357, %v363
    %v367 = vmul.f32 %v253, %v356
    %v368 = vmul.f32 %v254, %v364
    %v369 = vadd.f32 %v311, %v367
    %v370 = vadd.f32 %v312, %v368
    %s371 = scalar_lea.vmem %s0, 2
    %v372 = vld [vmem:[%s371] ss:$4 sm:$0x3f]
    %v374 = vlaneseq
    %v375 = vshrl.u32 %v374, 7
    %v376 = vsub.s32 0, %v375
    %v377 = vrot.slane %v372, %v376
    %v378 = vlaneseq
    %v379 = vshrl.u32 %v378, 7
    %v380 = vsub.s32 1, %v379
    %v381 = vrot.slane %v372, %v380
    %v382 = vlaneseq
    %v383 = vshrl.u32 %v382, 7
    %v384 = vsub.s32 2, %v383
    %v385 = vrot.slane %v372, %v384
    %v386 = vlaneseq
    %v387 = vshrl.u32 %v386, 7
    %v388 = vsub.s32 3, %v387
    %v389 = vrot.slane %v372, %v388
    %v390 = vlaneseq
    %v391 = vshrl.u32 %v390, 7
    %v392 = vsub.s32 4, %v391
    %v393 = vrot.slane %v372, %v392
    %v394 = vlaneseq
    %v395 = vshrl.u32 %v394, 7
    %v396 = vsub.s32 5, %v395
    %v397 = vrot.slane %v372, %v396
    %v398 = vcombine.low %v377, %v381
    %v399 = vcombine.low %v385, %v389
    %v401 = vunpack.c.l.s4 1983009808
    %v402 = vunpack.c.0.s8 %v401
    %v403 = vlaneseq
    %v404 = vshrl.u32 %v403, 7
    %v405 = vsub.s32 %v402, %v404
    %v406 = vrot.slane %v398, %v405
    %v408 = vunpack.c.l.s4 1983009808
    %v409 = vunpack.c.0.s8 %v408
    %v410 = vlaneseq
    %v411 = vshrl.u32 %v410, 7
    %v412 = vsub.s32 %v409, %v411
    %v413 = vrot.slane %v399, %v412
    %v414 = vcombine.low %v406, %v413
    %v415 = vcombine.low %v393, %v397
    %v417 = vunpack.c.l.s4 1983009808
    %v418 = vunpack.c.0.s8 %v417
    %v419 = vlaneseq
    %v420 = vshrl.u32 %v419, 7
    %v421 = vsub.s32 %v418, %v420
    %v422 = vrot.slane %v415, %v421
    %v425 = vmul.f32 %v256, %v414
    %v426 = vmul.f32 %v257, %v422
    %v427 = vadd.f32 %v369, %v425
    %v428 = vadd.f32 %v370, %v426
    %v431 = vcombine.high %v427, %v427
    %v433 = vunpack.c.l.s4 1983009808
    %v434 = vunpack.c.0.s8 %v433
    %v435 = vlaneseq
    %v436 = vshrl.u32 %v435, 7
    %v437 = vsub.s32 %v434, %v436
    %v438 = vrot.slane %v427, %v437
    %v440 = vunpack.c.l.s4 1983009808
    %v441 = vunpack.c.0.s8 %v440
    %v442 = vlaneseq
    %v443 = vshrl.u32 %v442, 7
    %v444 = vsub.s32 %v441, %v443
    %v445 = vrot.slane %v431, %v444
    %v446 = vcombine.high %v438, %v438
    %v447 = vcombine.high %v445, %v445
    %v449 = vunpack.c.l.s4 1983009808
    %v450 = vunpack.c.0.s8 %v449
    %v451 = vlaneseq
    %v452 = vshrl.u32 %v451, 7
    %v453 = vsub.s32 %v450, %v452
    %v454 = vrot.slane %v428, %v453
    %v455 = vcombine.high %v454, %v454
    %vm462 = vcmask 1041408
    %v463 = vsel %vm462, %v438, 0.0
    %v464 = vsel %vm462, %v446, 0.0
    %v465 = vadd.f32 %v463, %v464
    %v466 = vsel %vm462, %v445, 0.0
    %v467 = vadd.f32 %v465, %v466
    %v468 = vsel %vm462, %v447, 0.0
    %v469 = vadd.f32 %v467, %v468
    %v470 = vsel %vm462, %v454, 0.0
    %v471 = vadd.f32 %v469, %v470
    %v472 = vsel %vm462, %v455, 0.0
    %v473 = vadd.f32 %v471, %v472
    %474 = vadd.xlane.f32.xlu0 %v473
    %v475 = vpop.xlane.xlu0 %474
    %s476 = sld [smem:[#allocation2]]
    %v477 = vstv %s476
    %v478 = vadd.f32 %v475, %v477
    %vm479 = vcmask 1024
    %480 = vst.msk [vmem:[%s5] sm:$0x3] %vm479, %v478
    // Predicated region
    $region22: #{deberta_layer_cat_head.2} parent=1 // pred_check
      _
    $region23: #{deberta_layer_cat_head.2} parent=1 // pred_check_branch
      %482 = sbr.rel (0) target = $region25
    $region24: #{deberta_layer_cat_head.2} parent=1 // pred_region
      _
    $region25: #{deberta_layer_cat_head.2} parent=1 // pred_fallthru
      _
    // Predicated region
    $region26: #{deberta_layer_cat_head.2} parent=1 // pred_check
      _
    $region27: #{deberta_layer_cat_head.2} parent=1 // pred_check_branch
      %484 = sbr.rel (0) target = $region29
    $region28: #{deberta_layer_cat_head.2} parent=1 // pred_region
      _
    $region29: #{deberta_layer_cat_head.2} parent=1 // pred_fallthru
      _

</llo_original>
